<compile_context>
chip_gen: v7x
topology: tpu7x:2x2x1
jax: 0.10.0
libtpu: 0.0.40
codegen_flags: <defaults>
</compile_context>

<pallas_src>
import functools
import math

import jax
import jax.numpy as jnp
from jax.experimental import pallas as pl
from jax.experimental.pallas import tpu as pltpu


def _build_pe(max_len: int, d_model: int) -> jnp.ndarray:
    """Deterministic sinusoidal table, shape (max_len, 1, d_model), float32."""
    position = jnp.arange(0, max_len, dtype=jnp.float32)[:, None]            # (L, 1)
    div_term = jnp.exp(
        jnp.arange(0, d_model, 2, dtype=jnp.float32)
        * (-math.log(10000.0) / d_model)
    )                                                                         # (D/2,)
    angles = position * div_term                                              # (L, D/2)
    pe = jnp.zeros((max_len, d_model), dtype=jnp.float32)
    pe = pe.at[:, 0::2].set(jnp.sin(angles))
    pe = pe.at[:, 1::2].set(jnp.cos(angles))
    return pe[:, None, :]                                                     # (L, 1, D)


def _pos_enc_kernel(x_ref, pe_ref, o_ref, *, batch: int, d_model: int):
    # x_ref / o_ref : (seq_tile, batch * d_model)    pe_ref : (seq_tile, d_model)
    # Batch broadcast of pe via static lane slices (128-aligned when D % 128 == 0),
    # so every load/store stays dense; the add runs on the VPU, one vreg at a time.
    pe_blk = pe_ref[...].astype(jnp.float32)
    for b in range(batch):  # static unroll; `batch` is a compile-time constant
        sl = slice(b * d_model, (b + 1) * d_model)
        o_ref[:, sl] = (x_ref[:, sl].astype(jnp.float32) + pe_blk).astype(o_ref.dtype)


def _choose_seq_tile(seq_len: int, row_bytes: int, target_bytes: int) -> int:
    """Largest multiple-of-8 divisor of seq_len whose x-block fits target_bytes,
    preferring >=2 grid steps (megacore sharding on v7x)."""
    if seq_len % 8 != 0:
        return seq_len  # single full-extent block (block dims == array dims)
    divs = [t for t in range(8, seq_len + 1, 8) if seq_len % t == 0]
    fitting = [t for t in divs if t * row_bytes <= target_bytes]
    if not fitting:
        return divs[0]  # rows are huge; use the smallest legal tile
    multi = [t for t in fitting if t < seq_len]
    return max(multi) if multi else max(fitting)


def positional_encoding(
    x: jnp.ndarray,
    pe: jnp.ndarray,
    *,
    seq_tile: int | None = None,
    target_block_bytes: int = 2 << 20,   # ~2 MiB x-blocks: near HBM roofline
    donate_x: bool = False,              # optionally alias x's HBM buffer as the output
) -> jnp.ndarray:
    """x: (S, B, D); pe: (max_len, 1, D) float32 -> (S, B, D) of x.dtype."""
    S, B, D = x.shape
    assert pe.shape[0] >= S and pe.shape[-1] == D

    # Free, contiguous reshapes (no data movement).
    x2 = x.reshape(S, B * D)
    pe2 = pe.reshape(pe.shape[0], D)

    itemsize = jnp.dtype(x.dtype).itemsize
    row_bytes = B * D * itemsize

    if seq_tile is None:
        seq_tile = _choose_seq_tile(S, row_bytes, target_block_bytes)
    seq_tile = max(1, min(int(seq_tile), S))
    if S % seq_tile != 0 or seq_tile % 8 != 0:
        seq_tile = S  # fall back to one full-extent block along seq

    if seq_tile % 8 == 0:
        pe_arg = pe2            # full table; index_map picks rows (no HBM slice copy)
    else:
        pe_arg = pe2[:S]        # block dims must equal full array dims in this fallback

    grid = (S // seq_tile,)

    # Explicit VMEM budget: double-buffered x-in + out + pe blocks (+2 MiB margin).
    blk_x = seq_tile * B * D * itemsize
    blk_pe = seq_tile * D * jnp.dtype(pe.dtype).itemsize
    vmem_need = 2 * (2 * blk_x + blk_pe)
    vmem_limit = int(max(vmem_need + (2 << 20), 16 << 20))

    kernel = functools.partial(_pos_enc_kernel, batch=B, d_model=D)

    out2 = pl.pallas_call(
        kernel,
        out_shape=jax.ShapeDtypeStruct((S, B * D), x.dtype),
        grid_spec=pltpu.PrefetchScalarGridSpec(
            num_scalar_prefetch=0,
            grid=grid,
            in_specs=[
                pl.BlockSpec((seq_tile, B * D), lambda i: (i, 0)),   # x
                pl.BlockSpec((seq_tile, D), lambda i: (i, 0)),       # pe rows 0..S
            ],
            out_specs=pl.BlockSpec((seq_tile, B * D), lambda i: (i, 0)),
        ),
        compiler_params=pltpu.CompilerParams(
            dimension_semantics=("parallel",),
            vmem_limit_bytes=vmem_limit,
        ),
        input_output_aliases=({0: 0} if donate_x else {}),
    )(x2, pe_arg)

    return out2.reshape(S, B, D)


if __name__ == "__main__":
    # Small shapes consistent with the module; d_model=128 keeps B*D a multiple
    # of 128 so all loads/stores are fully lane-dense; S=32 gives a 2-step grid.
    d_model = 128
    max_len = 128          # small stand-in for 5000; semantics identical for S <= max_len
    S, B = 32, 2

    key = jax.random.PRNGKey(0)
    x = jax.random.normal(key, (S, B, d_model), dtype=jnp.float32)

    pe = _build_pe(max_len, d_model)

    out = positional_encoding(x, pe)
    out = jax.block_until_ready(out)

    # Reference check in plain JAX (eval-mode dropout == identity).
    ref = x + pe[:S]
    assert out.shape == (S, B, d_model)
    assert jnp.allclose(out, ref, atol=1e-6, rtol=1e-6)

    print("KERNEL_OK")
</pallas_src>

<mosaic_0001>
module attributes {stable_mosaic.version = 11 : i64} {
  func.func @_pos_enc_kernel(%arg0: i32, %arg1: memref<16x256xf32, #tpu.memory_space<vmem>>, %arg2: memref<16x128xf32, #tpu.memory_space<vmem>>, %arg3: memref<16x256xf32, #tpu.memory_space<vmem>>) attributes {dimension_semantics = [#tpu.dimension_semantics<parallel>], iteration_bounds = array<i64: 2>, scalar_prefetch = 0 : i64, scratch_operands = 0 : i64, tpu.core_type = #tpu.core_type<tc>, window_params = [{transform_indices = @transform_0, window_bounds = array<i64: 16, 256>}, {transform_indices = @transform_1, window_bounds = array<i64: 16, 128>}, {transform_indices = @transform_2, window_bounds = array<i64: 16, 256>}]} {
    %c0 = arith.constant 0 : index
    %c0_0 = arith.constant 0 : index
    %0 = vector.load %arg2[%c0, %c0_0] : memref<16x128xf32, #tpu.memory_space<vmem>>, vector<16x128xf32>
    %c0_1 = arith.constant 0 : index
    %c0_2 = arith.constant 0 : index
    %1 = vector.load %arg1[%c0_1, %c0_2] : memref<16x256xf32, #tpu.memory_space<vmem>>, vector<16x128xf32>
    %2 = arith.addf %1, %0 : vector<16x128xf32>
    %c0_3 = arith.constant 0 : index
    %c0_4 = arith.constant 0 : index
    %3 = vector.load %arg3[%c0_3, %c0_4] : memref<16x256xf32, #tpu.memory_space<vmem>>, vector<16x128xf32>
    tpu.vector_store %arg3[%c0_3, %c0_4], %2 {strides = array<i32>} : memref<16x256xf32, #tpu.memory_space<vmem>>, vector<16x128xf32>,
    %c0_5 = arith.constant 0 : index
    %c128 = arith.constant 128 : index
    %4 = vector.load %arg1[%c0_5, %c128] : memref<16x256xf32, #tpu.memory_space<vmem>>, vector<16x128xf32>
    %5 = arith.addf %4, %0 : vector<16x128xf32>
    %c0_6 = arith.constant 0 : index
    %c128_7 = arith.constant 128 : index
    %6 = vector.load %arg3[%c0_6, %c128_7] : memref<16x256xf32, #tpu.memory_space<vmem>>, vector<16x128xf32>
    tpu.vector_store %arg3[%c0_6, %c128_7], %5 {strides = array<i32>} : memref<16x256xf32, #tpu.memory_space<vmem>>, vector<16x128xf32>,
    return
  }
  func.func @transform_0(%arg0: i32) -> (i32, i32) {
    %c0_i32 = arith.constant 0 : i32
    %c0_i32_0 = arith.constant 0 : i32
    return %arg0, %c0_i32 : i32, i32
  }
  func.func @transform_1(%arg0: i32) -> (i32, i32) {
    %c0_i32 = arith.constant 0 : i32
    %c0_i32_0 = arith.constant 0 : i32
    return %arg0, %c0_i32 : i32, i32
  }
  func.func @transform_2(%arg0: i32) -> (i32, i32) {
    %c0_i32 = arith.constant 0 : i32
    %c0_i32_0 = arith.constant 0 : i32
    return %arg0, %c0_i32 : i32, i32
  }
}

</mosaic_0001>

<llo_original>
// kernel: tpu_custom_call.1
$region0: #{tpu_custom_call.1}
  #allocation0 [shape = 'u32[]', space=smem, size = 0x4, offset = 0x4, fixed_abs, tag = 'smem constant byte address 0x4 - core index']
  #allocation1 [shape = 'u32[144,128]{1,0:T(1,128)}', space=vmem, size = 0x12000, scoped, tag = 'internal scratch']
  %s0 = inlined_call_operand.hbm [shape: f32[32,256], index: 0, kind: input, shape index: {}]
  %s1 = inlined_call_operand.hbm [shape: f32[128,128], index: 1, kind: input, shape index: {}]
  %s2 = inlined_call_operand.hbm [shape: f32[32,256], index: 2, kind: output, shape index: {}]
  %s3 = sld [smem:[#allocation0]]
  $region49: #{tpu_custom_call.1} parent=0
    _
  %s5 = ssub.s32 1, %s3
  %s6 = scalar_select 0, %s5, %s3
  $region1: #{tpu_custom_call.1} parent=0
    #allocation2 [shape = 'u8[32768]{0}', space=vmem, size = 0x8000, scoped, tag = 'input window, operand 0']
    #allocation3 [shape = 's32[2]{0}', space=sflag, size = 0x8, scoped, tag = 'scoped memory for tpu_custom_call.1']
    #allocation4 [shape = 's32[2]{0}', space=sflag, size = 0x8, scoped, tag = 'scoped memory for tpu_custom_call.1']
    #allocation5 [shape = 'u8[16384]{0}', space=vmem, size = 0x4000, scoped, tag = 'input window, operand 1']
    #allocation6 [shape = 's32[2]{0}', space=sflag, size = 0x8, scoped, tag = 'scoped memory for tpu_custom_call.1']
    #allocation7 [shape = 'u8[32768]{0}', space=vmem, size = 0x8000, scoped, tag = 'output window, operand 0']
    %7 = vsyncpa [#allocation3], 0
    %s8 = scalar_lea.sflag [#allocation3], 1
    %9 = vsyncpa %s8, 0
    %10 = vsyncpa [#allocation6], 0
    %s11 = scalar_lea.sflag [#allocation6], 1
    %12 = vsyncpa %s11, 0
    %13 = vsyncpa [#allocation4], 0
    %s14 = scalar_lea.sflag [#allocation4], 1
    %15 = vsyncpa %s14, 0
    loop: start=0, step=1, limit=4
    $region2: #{tpu_custom_call.1} parent=1 // loop_pre_header
      _
    $region3: #{tpu_custom_call.1} parent=1 // loop_header
      %s17 = sphi 0, %s21
      %p18 = scmp.ge.s32.totalorder %s17, 4
      %s27 = sphi 0, %s29
      %s30 = sphi 0, %s27
      %s31 = sphi 0, %s30
      %s47 = sphi 0, %s31
      %s53 = sphi 0, %s55
      %s56 = sphi 0, %s53
      %s57 = sphi 0, %s56
      %s73 = sphi 0, %s57
      %s79 = sphi 0, %s81
      %s82 = sphi 0, %s79
      %s83 = sphi 0, %s82
      %s99 = sphi 0, %s83
    $region4: #{tpu_custom_call.1} parent=1 // loop_header_branch
      %20 = sbr.rel (%p18) target = $region8
    $region5: #{tpu_custom_call.1} parent=1 // loop_body
      %s22 = ssub.s32 %s17, 1
      %s23 = ssub.s32 %s17, 2
      %s24 = sadd.s32 %s17, 1
      %s25 = ssub.s32 %s17, %s24
      %p26 = scmp.eq.s32.totalorder %s25, 0
      %s28 = sadd.s32 %s27, 1
      %s29 = scalar_select %p26, %s27, %s28
      %p32 = pneg %p26
      %p33 = scmp.eq.s32.totalorder %s17, 1
      %p34 = por %p32, %p33
      %p35 = scmp.ne.s32.totalorder %s27, %s30
      %p36 = scmp.eq.s32.totalorder %s17, 0
      %p37 = por %p35, %p36
      %p38 = scmp.ne.s32.totalorder %s27, %s30
      %p39 = scmp.eq.s32.totalorder %s22, 1
      %p40 = por %p38, %p39
      %p41 = scmp.ne.s32.totalorder %s30, %s31
      %p42 = scmp.eq.s32.totalorder %s22, 0
      %p43 = por %p41, %p42
      %p44 = scmp.ne.s32.totalorder %s30, %s31
      %p45 = scmp.eq.s32.totalorder %s23, 1
      %p46 = por %p44, %p45
      %p48 = scmp.ne.s32.totalorder %s31, %s47
      %p49 = scmp.eq.s32.totalorder %s23, 0
      %p50 = por %p48, %p49
      %s51 = ssub.s32 %s17, %s24
      %p52 = scmp.eq.s32.totalorder %s51, 0
      %s54 = sadd.s32 %s53, 1
      %s55 = scalar_select %p52, %s53, %s54
      %p58 = pneg %p52
      %p59 = scmp.eq.s32.totalorder %s17, 1
      %p60 = por %p58, %p59
      %p61 = scmp.ne.s32.totalorder %s53, %s56
      %p62 = scmp.eq.s32.totalorder %s17, 0
      %p63 = por %p61, %p62
      %p64 = scmp.ne.s32.totalorder %s53, %s56
      %p65 = scmp.eq.s32.totalorder %s22, 1
      %p66 = por %p64, %p65
      %p67 = scmp.ne.s32.totalorder %s56, %s57
      %p68 = scmp.eq.s32.totalorder %s22, 0
      %p69 = por %p67, %p68
      %p70 = scmp.ne.s32.totalorder %s56, %s57
      %p71 = scmp.eq.s32.totalorder %s23, 1
      %p72 = por %p70, %p71
      %p74 = scmp.ne.s32.totalorder %s57, %s73
      %p75 = scmp.eq.s32.totalorder %s23, 0
      %p76 = por %p74, %p75
      %s77 = ssub.s32 %s17, %s24
      %p78 = scmp.eq.s32.totalorder %s77, 0
      %s80 = sadd.s32 %s79, 1
      %s81 = scalar_select %p78, %s79, %s80
      %p84 = pneg %p78
      %p85 = scmp.eq.s32.totalorder %s17, 1
      %p86 = por %p84, %p85
      %p87 = scmp.ne.s32.totalorder %s79, %s82
      %p88 = scmp.eq.s32.totalorder %s17, 0
      %p89 = por %p87, %p88
      %p90 = scmp.ne.s32.totalorder %s79, %s82
      %p91 = scmp.eq.s32.totalorder %s22, 1
      %p92 = por %p90, %p91
      %p93 = scmp.ne.s32.totalorder %s82, %s83
      %p94 = scmp.eq.s32.totalorder %s22, 0
      %p95 = por %p93, %p94
      %p96 = scmp.ne.s32.totalorder %s82, %s83
      %p97 = scmp.eq.s32.totalorder %s23, 1
      %p98 = por %p96, %p97
      %p100 = scmp.ne.s32.totalorder %s83, %s99
      %p101 = scmp.eq.s32.totalorder %s23, 0
      %p102 = por %p100, %p101
      %p103 = scmp.le.s32.totalorder 1, %s17
      %p104 = scmp.lt.s32.totalorder %s17, 3
      %p105 = pnand %p103, %p104
      %p106 = pneg %p105
      // Predicated region
      $region9: #{tpu_custom_call.1} parent=5 // pred_check
        _
      $region10: #{tpu_custom_call.1} parent=5 // pred_check_branch
        %108 = sbr.rel (%p105) target = $region12
      $region11: #{tpu_custom_call.1} parent=5 // pred_region
        %s109 = ssub.s32 %s17, 1
      $region12: #{tpu_custom_call.1} parent=5 // pred_fallthru
        _
      %p110 = scmp.lt.s32.totalorder %s17, 2
      // Predicated region
      $region13: #{tpu_custom_call.1} parent=5 // pred_check
        %p111 = pneg %p110
      $region14: #{tpu_custom_call.1} parent=5 // pred_check_branch
        %113 = sbr.rel (%p111) target = $region16
      $region15: #{tpu_custom_call.1} parent=5 // pred_region
        // Predicated region
        $region17: #{tpu_custom_call.1} parent=15 // pred_check
          %p114 = pneg %p37
        $region18: #{tpu_custom_call.1} parent=15 // pred_check_branch
          %116 = sbr.rel (%p114) target = $region20
        $region19: #{tpu_custom_call.1} parent=15 // pred_region
          %s117 = sand.u32 %s27, 1
          %s118 = scalar_lea.sflag [#allocation3], %s117
          %s119 = sand.u32 %s27, 1
          %s120 = smul.addr %s119, 32
          %s121 = scalar_lea.vmem [#allocation2], %s120
          %s122 = smul.u32 2, %s17
          %s124 = ssub.s32 512, 512
          %125 = vsyncadd %s118, %s124
          %s126 = smul.addr %s122, 2
          %s127 = smul.addr %s126, 128
          %s128 = scalar_lea.hbm %s0, %s127
          %s129 = sshll.u32 %s121, 4
          %s130 = int_to_ptr.vmem [resolvable:$true] %s129
          %135 = dma.hbm_to_vmem [thread:$0]  %s128, 512, %s130, %s118, 256, 256, 16
        $region20: #{tpu_custom_call.1} parent=15 // pred_fallthru
          _
        // Predicated region
        $region21: #{tpu_custom_call.1} parent=15 // pred_check
          %p136 = pneg %p63
        $region22: #{tpu_custom_call.1} parent=15 // pred_check_branch
          %138 = sbr.rel (%p136) target = $region24
        $region23: #{tpu_custom_call.1} parent=15 // pred_region
          %s139 = sand.u32 %s53, 1
          %s140 = scalar_lea.sflag [#allocation6], %s139
          %s141 = sand.u32 %s53, 1
          %s142 = smul.addr %s141, 16
          %s143 = scalar_lea.vmem [#allocation5], %s142
          %s144 = smul.u32 2, %s17
          %s146 = ssub.s32 256, 256
          %147 = vsyncadd %s140, %s146
          %s148 = smul.addr %s144, 128
          %s149 = scalar_lea.hbm %s1, %s148
          %s150 = sshll.u32 %s143, 4
          %s151 = int_to_ptr.vmem [resolvable:$true] %s150
          %156 = dma.hbm_to_vmem [thread:$0]  %s149, 256, %s151, %s140, 128, 128, 8
        $region24: #{tpu_custom_call.1} parent=15 // pred_fallthru
          _
      $region16: #{tpu_custom_call.1} parent=5 // pred_fallthru
        _
      %p157 = scmp.le.s32.totalorder 1, %s17
      %p158 = scmp.lt.s32.totalorder %s17, 3
      %p159 = pnand %p157, %p158
      %p160 = pneg %p159
      // Predicated region
      $region25: #{tpu_custom_call.1} parent=5 // pred_check
        _
      $region26: #{tpu_custom_call.1} parent=5 // pred_check_branch
        %162 = sbr.rel (%p159) target = $region28
      $region27: #{tpu_custom_call.1} parent=5 // pred_region
        %s163 = ssub.s32 %s17, 1
        %s164 = sand.u32 %s30, 1
        %s165 = scalar_lea.sflag [#allocation3], %s164
        %s166 = sand.u32 %s30, 1
        %s167 = smul.addr %s166, 32
        %s168 = scalar_lea.vmem [#allocation2], %s167
        // Predicated region
        $region29: #{tpu_custom_call.1} parent=27 // pred_check
          %p169 = pneg %p43
        $region30: #{tpu_custom_call.1} parent=27 // pred_check_branch
          %171 = sbr.rel (%p169) target = $region32
        $region31: #{tpu_custom_call.1} parent=27 // pred_region
          %172 = dma.done %s165, 512
        $region32: #{tpu_custom_call.1} parent=27 // pred_fallthru
          _
        %s173 = sand.u32 %s56, 1
        %s174 = scalar_lea.sflag [#allocation6], %s173
        %s175 = sand.u32 %s56, 1
        %s176 = smul.addr %s175, 16
        %s177 = scalar_lea.vmem [#allocation5], %s176
        // Predicated region
        $region33: #{tpu_custom_call.1} parent=27 // pred_check
          %p178 = pneg %p69
        $region34: #{tpu_custom_call.1} parent=27 // pred_check_branch
          %180 = sbr.rel (%p178) target = $region36
        $region35: #{tpu_custom_call.1} parent=27 // pred_region
          %181 = dma.done %s174, 256
        $region36: #{tpu_custom_call.1} parent=27 // pred_fallthru
          _
        %s182 = sand.u32 %s30, 1
        %s183 = scalar_lea.sflag [#allocation3], %s182
        %s184 = sand.u32 %s30, 1
        %s185 = smul.addr %s184, 32
        %s186 = scalar_lea.vmem [#allocation2], %s185
        %p187 = pneg %p43
        %p188 = pneg %p40
        %s189 = sand.u32 %s56, 1
        %s190 = scalar_lea.sflag [#allocation6], %s189
        %s191 = sand.u32 %s56, 1
        %s192 = smul.addr %s191, 16
        %s193 = scalar_lea.vmem [#allocation5], %s192
        %p194 = pneg %p69
        %p195 = pneg %p66
        %p196 = pneg %p95
        %p197 = pneg %p92
        %s198 = sand.u32 %s82, 1
        %s199 = scalar_lea.sflag [#allocation4], %s198
        %s200 = sand.u32 %s82, 1
        %s201 = smul.addr %s200, 32
        %s202 = scalar_lea.vmem [#allocation7], %s201
        %s203 = smul.u32 2, %s22
        %s204 = smul.u32 2, %s22
        %s205 = smul.u32 2, %s22
        %v206 = vld [vmem:[%s177] sm:$0xff]
        %v207 = vld [vmem:[%s177 + $0x8] sm:$0xff]
        %v208 = vld [vmem:[%s168] sm:$0xff]
        %v209 = vld [vmem:[%s168 + $0x10] sm:$0xff]
        %v210 = vadd.f32 %v208, %v206
        %v211 = vadd.f32 %v209, %v207
        %212 = vst [vmem:[%s202] sm:$0xff] %v210
        %213 = vst [vmem:[%s202 + $0x10] sm:$0xff] %v211
        %v214 = vld [vmem:[%s168 + $0x8] sm:$0xff]
        %v215 = vld [vmem:[%s168 + $0x18] sm:$0xff]
        %v216 = vadd.f32 %v214, %v206
        %v217 = vadd.f32 %v215, %v207
        %218 = vst [vmem:[%s202 + $0x8] sm:$0xff] %v216
        %219 = vst [vmem:[%s202 + $0x18] sm:$0xff] %v217
        %s220 = sand.u32 %s82, 1
        %s221 = scalar_lea.sflag [#allocation4], %s220
        %s222 = sand.u32 %s82, 1
        %s223 = smul.addr %s222, 32
        %s224 = scalar_lea.vmem [#allocation7], %s223
        // Predicated region
        $region37: #{tpu_custom_call.1} parent=27 // pred_check
          %p225 = pneg %p92
        $region38: #{tpu_custom_call.1} parent=27 // pred_check_branch
          %227 = sbr.rel (%p225) target = $region40
        $region39: #{tpu_custom_call.1} parent=27 // pred_region
          %s228 = smul.u32 2, %s22
          %s230 = ssub.s32 512, 512
          %231 = vsyncadd %s221, %s230
          %s232 = smul.addr %s228, 2
          %s233 = smul.addr %s232, 128
          %s234 = scalar_lea.hbm %s2, %s233
          %s235 = sshll.u32 %s224, 4
          %s236 = int_to_ptr.vmem [resolvable:$true] %s235
          %241 = dma.vmem_to_hbm [thread:$0]  %s236, 512, %s234, %s221, 256, 256, 16
        $region40: #{tpu_custom_call.1} parent=27 // pred_fallthru
          _
      $region28: #{tpu_custom_call.1} parent=5 // pred_fallthru
        _
      %p242 = scmp.le.s32.totalorder 2, %s17
      // Predicated region
      $region41: #{tpu_custom_call.1} parent=5 // pred_check
        %p243 = pneg %p242
      $region42: #{tpu_custom_call.1} parent=5 // pred_check_branch
        %245 = sbr.rel (%p243) target = $region44
      $region43: #{tpu_custom_call.1} parent=5 // pred_region
        %s246 = ssub.s32 %s17, 2
        // Predicated region
        $region45: #{tpu_custom_call.1} parent=43 // pred_check
          %p247 = pneg %p98
        $region46: #{tpu_custom_call.1} parent=43 // pred_check_branch
          %249 = sbr.rel (%p247) target = $region48
        $region47: #{tpu_custom_call.1} parent=43 // pred_region
          %s250 = sand.u32 %s83, 1
          %s251 = scalar_lea.sflag [#allocation4], %s250
          %s252 = sand.u32 %s83, 1
          %s253 = smul.addr %s252, 32
          %s254 = scalar_lea.vmem [#allocation7], %s253
          %255 = dma.done %s251, 512
        $region48: #{tpu_custom_call.1} parent=43 // pred_fallthru
          _
      $region44: #{tpu_custom_call.1} parent=5 // pred_fallthru
        _
    $region6: #{tpu_custom_call.1} parent=1 // loop_footer
      %s21 = sadd.s32 1, %s17
    $region7: #{tpu_custom_call.1} parent=1 // loop_footer_branch
      %16 = sbr.rel target = $region3
    $region8: #{tpu_custom_call.1} parent=1 // loop_exit
      _
    %256 = vsyncpa [#allocation3], 1
    %s257 = scalar_lea.sflag [#allocation3], 1
    %258 = vsyncpa %s257, 1
    %259 = vsyncpa [#allocation6], 1
    %s260 = scalar_lea.sflag [#allocation6], 1
    %261 = vsyncpa %s260, 1
    %262 = vsyncpa [#allocation4], 1
    %s263 = scalar_lea.sflag [#allocation4], 1
    %264 = vsyncpa %s263, 1

</llo_original>
